<compile_context>
chip_gen: v5e
topology: v5e:2x2
jax: 0.10.0
libtpu: 0.0.40
codegen_flags: <defaults>
</compile_context>

<pallas_src>
import functools

import numpy as np
import jax
import jax.numpy as jnp
from jax import lax
from jax.experimental import pallas as pl
from jax.experimental.pallas import tpu as pltpu


def _mfds_kernel(x_ref, m_ref, dwv_ref, pwt_ref, bias_ref, o_ref,
                 pad_ref, d_ref, *, H, W, C_in, C_out):
    # x_ref   : (B_tile*C_in,  HW)          VMEM, rows ordered (image, in-channel)
    # m_ref   : (2, HW)                     VMEM column-edge masks:
    #                                         row 0 zeroes j==0   (dx = -1 taps)
    #                                         row 1 zeroes j==W-1 (dx = +1 taps)
    # dwv_ref : (B_tile*C_in, 9)            VMEM, per-row 3x3 taps (row-major dy,dx)
    # pwt_ref : (C_out, C_in)               VMEM, pointwise weights (transposed)
    # bias_ref: (C_out, 1)                  VMEM, bias
    # o_ref   : (B_tile*C_out, HW)          VMEM, rows ordered (image, out-channel)
    # pad_ref : (B_tile*C_in, 2*PAD + HW)   VMEM scratch: flat rows with zero halo
    # d_ref   : (B_tile*C_in, HW)           VMEM scratch: depthwise output
    HW = H * W
    rows_in = x_ref.shape[0]
    b_tile = rows_in // C_in
    PAD = (pad_ref.shape[1] - HW) // 2       # 128-aligned halo, >= W+1

    # Build the zero-halo'd flat rows once per step (single sublane/lane-dense
    # copy of the whole block).  Stencil reads that fall off the top/bottom of
    # the image land in the physical zeros; only the column wrap (dx = +/-1 at
    # j = 0 / W-1) needs masking.
    zeros_halo = jnp.zeros((rows_in, PAD), jnp.float32)
    pad_ref[:, pl.ds(0, PAD)] = zeros_halo
    pad_ref[:, pl.ds(PAD + HW, PAD)] = zeros_halo
    pad_ref[:, pl.ds(PAD, HW)] = x_ref[...].astype(jnp.float32)
    # TODO(synk): for bf16 activations keep this scratch (and the MACs below)
    # in bf16 on v6e/v7x and only accumulate in f32; v5e has no bf16 VPU path.

    # Hoisted column-edge masks (loaded once per grid step).
    m_left = m_ref[pl.ds(0, 1), :]      # 0.0 where j == 0
    m_right = m_ref[pl.ds(1, 1), :]     # 0.0 where j == W-1

    # ---- depthwise 3x3 on the full (rows_in, HW) block at once -------------
    # Nine statically shifted lane-slices; per-row tap weight is a (rows, 1)
    # lane-broadcast.  Taps grouped by dx so each edge mask is applied once
    # per group.
    d = None
    for dx in (-1, 0, 1):
        s = None
        for dy in (-1, 0, 1):
            t = (dy + 1) * 3 + (dx + 1)
            v = pad_ref[:, pl.ds(PAD + dy * W + dx, HW)]       # (rows_in, HW)
            term = v * dwv_ref[:, pl.ds(t, 1)]                 # * (rows_in, 1)
            s = term if s is None else s + term
        if dx == -1:
            s = s * m_left
        elif dx == 1:
            s = s * m_right
        d = s if d is None else d + s
    d_ref[...] = d

    # ---- pointwise 1x1 + bias + ReLU (MXU deliberately unused: K=C_in and
    #      N=C_out are << 128, so an MXU matmul would run <1% utilized) ------
    bias = bias_ref[...]                                       # (C_out, 1)
    for b in range(b_tile):
        acc = None
        for ci in range(C_in):
            d_row = d_ref[pl.ds(b * C_in + ci, 1), :]          # (1, HW)
            # (1, HW) * (C_out, 1) -> (C_out, HW): full sublane-dense tile.
            term = d_row * pwt_ref[:, pl.ds(ci, 1)]
            acc = term if acc is None else acc + term
        y = jnp.maximum(acc + bias, 0.0)
        # Sublane-aligned (multiple-of-8 row offset) and lane-dense store.
        o_ref[pl.ds(b * C_out, C_out), :] = y.astype(o_ref.dtype)


def _col_edge_masks(H, W):
    """0/1 float masks along the flattened H*W axis for the dx=-1 / dx=+1 taps."""
    j = np.tile(np.arange(W), H)
    left = (j != 0).astype(np.float32)        # used by dx = -1 taps
    right = (j != W - 1).astype(np.float32)   # used by dx = +1 taps
    return np.stack([left, right])            # (2, H*W)


def _pick_batch_block(N, C_in, C_out):
    """Images per grid step: largest divisor of N keeping sublane dims 8-aligned."""
    for bt in range(min(N, 8), 0, -1):
        if N % bt == 0 and (bt * C_in) % 8 == 0 and (bt * C_out) % 8 == 0:
            return bt
    return N      # block == full array extent is always a legal BlockSpec


def mfds_conv(x_nchw, dw, pw, bias):
    """x_nchw: (N, C_in, H, W); dw: (3,3,C_in); pw: (C_in, C_out); bias: (C_out,)."""
    N, C_in, H, W = x_nchw.shape
    C_out = pw.shape[1]
    HW = H * W
    b_tile = _pick_batch_block(N, C_in, C_out)
    pad = ((W + 1 + 127) // 128) * 128        # 128-aligned halo >= W+1
    rows_in = b_tile * C_in
    rows_out = b_tile * C_out

    # Free reshapes of contiguous dims — no transpose / pad HBM passes.
    x2d = x_nchw.reshape(N * C_in, HW)
    dwv = jnp.tile(dw.reshape(9, C_in).T, (b_tile, 1))   # (rows_in, 9) per-row taps
    pwt = pw.T                                           # (C_out, C_in)
    b2d = bias.reshape(C_out, 1)
    masks = jnp.asarray(_col_edge_masks(H, W))

    out2d = pl.pallas_call(
        functools.partial(_mfds_kernel, H=H, W=W, C_in=C_in, C_out=C_out),
        out_shape=jax.ShapeDtypeStruct((N * C_out, HW), x_nchw.dtype),
        grid_spec=pltpu.PrefetchScalarGridSpec(
            num_scalar_prefetch=0,
            grid=(N // b_tile,),
            in_specs=[
                pl.BlockSpec((rows_in, HW), lambda b: (b, 0)),
                # Constant operands: same block every step, so they are not
                # re-fetched across grid iterations.
                pl.BlockSpec((2, HW), lambda b: (0, 0)),
                pl.BlockSpec((rows_in, 9), lambda b: (0, 0)),
                pl.BlockSpec((C_out, C_in), lambda b: (0, 0)),
                pl.BlockSpec((C_out, 1), lambda b: (0, 0)),
            ],
            out_specs=pl.BlockSpec((rows_out, HW), lambda b: (b, 0)),
            scratch_shapes=[
                pltpu.VMEM((rows_in, 2 * pad + HW), jnp.float32),
                pltpu.VMEM((rows_in, HW), jnp.float32),
            ],
        ),
        compiler_params=pltpu.CompilerParams(
            dimension_semantics=("parallel",),
            vmem_limit_bytes=64 * 1024 * 1024,
        ),
    )(x2d, masks, dwv, pwt, b2d)

    # TODO(synk): at realistic H/W/C add an H-row-strip grid axis (with a 1-row
    # halo re-read) so the per-step block + double buffering stays well inside
    # v7x's 64 MiB VMEM and there are >=2 parallel tiles per chip.
    return out2d.reshape(N, C_out, H, W)


def mfds_conv_reference(x_nchw, dw, pw, bias):
    """Pure-JAX reference (lax convs) for correctness checking."""
    N, C_in, H, W = x_nchw.shape
    dw_hwio = dw.reshape(3, 3, C_in, 1).transpose(0, 1, 3, 2)   # (3,3,1,C_in) HWIO
    x_nhwc = jnp.transpose(x_nchw, (0, 2, 3, 1))
    depth = lax.conv_general_dilated(
        x_nhwc, dw_hwio, window_strides=(1, 1), padding="SAME",
        dimension_numbers=("NHWC", "HWIO", "NHWC"),
        feature_group_count=C_in)
    point = jnp.einsum("nhwc,co->nhwo", depth, pw) + bias
    point = jnp.maximum(point, 0.0)
    return jnp.transpose(point, (0, 3, 1, 2))


if __name__ == "__main__":
    key = jax.random.PRNGKey(0)
    k_x, k_dw, k_pw, k_b = jax.random.split(key, 4)

    N, C_in, C_out, H, W = 2, 4, 8, 16, 16

    x = jax.random.normal(k_x, (N, C_in, H, W), dtype=jnp.float32)
    dw = jax.random.normal(k_dw, (3, 3, C_in), dtype=jnp.float32) * 0.1
    pw = jax.random.normal(k_pw, (C_in, C_out), dtype=jnp.float32) * 0.1
    bias = jax.random.normal(k_b, (C_out,), dtype=jnp.float32) * 0.01

    out = jax.block_until_ready(mfds_conv(x, dw, pw, bias))
    ref = jax.block_until_ready(mfds_conv_reference(x, dw, pw, bias))

    assert out.shape == (N, C_out, H, W)
    assert jnp.allclose(out, ref, atol=1e-4, rtol=1e-4), "mismatch vs JAX reference"

    print("KERNEL_OK")
</pallas_src>

<mosaic_0001>
module attributes {stable_mosaic.version = 11 : i64} {
  func.func @_mfds_kernel(%arg0: i32, %arg1: memref<8x256xf32, #tpu.memory_space<vmem>>, %arg2: memref<2x256xf32, #tpu.memory_space<vmem>>, %arg3: memref<8x9xf32, #tpu.memory_space<vmem>>, %arg4: memref<8x4xf32, #tpu.memory_space<vmem>>, %arg5: memref<8x1xf32, #tpu.memory_space<vmem>>, %arg6: memref<16x256xf32, #tpu.memory_space<vmem>>, %arg7: memref<8x512xf32, #tpu.memory_space<vmem>>, %arg8: memref<8x256xf32, #tpu.memory_space<vmem>>) attributes {dimension_semantics = [#tpu.dimension_semantics<parallel>], iteration_bounds = array<i64: 1>, scalar_prefetch = 0 : i64, scratch_operands = 2 : i64, tpu.core_type = #tpu.core_type<tc>, window_params = [{transform_indices = @transform_0, window_bounds = array<i64: 8, 256>}, {pipeline_mode = #tpu.pipeline_mode<synchronous>, transform_indices = @transform_1, window_bounds = array<i64: 2, 256>}, {pipeline_mode = #tpu.pipeline_mode<synchronous>, transform_indices = @transform_2, window_bounds = array<i64: 8, 9>}, {pipeline_mode = #tpu.pipeline_mode<synchronous>, transform_indices = @transform_3, window_bounds = array<i64: 8, 4>}, {pipeline_mode = #tpu.pipeline_mode<synchronous>, transform_indices = @transform_4, window_bounds = array<i64: 8, 1>}, {transform_indices = @transform_5, window_bounds = array<i64: 16, 256>}]} {
    %cst = arith.constant 0.000000e+00 : f32
    %0 = vector.broadcast %cst : f32 to vector<8x128xf32>
    %c0 = arith.constant 0 : index
    %c0_0 = arith.constant 0 : index
    %1 = vector.load %arg7[%c0, %c0_0] : memref<8x512xf32, #tpu.memory_space<vmem>>, vector<8x128xf32>
    tpu.vector_store %arg7[%c0, %c0_0], %0 {strides = array<i32>} : memref<8x512xf32, #tpu.memory_space<vmem>>, vector<8x128xf32>,
    %c0_1 = arith.constant 0 : index
    %c384 = arith.constant 384 : index
    %2 = vector.load %arg7[%c0_1, %c384] : memref<8x512xf32, #tpu.memory_space<vmem>>, vector<8x128xf32>
    tpu.vector_store %arg7[%c0_1, %c384], %0 {strides = array<i32>} : memref<8x512xf32, #tpu.memory_space<vmem>>, vector<8x128xf32>,
    %c0_2 = arith.constant 0 : index
    %c0_3 = arith.constant 0 : index
    %3 = vector.load %arg1[%c0_2, %c0_3] : memref<8x256xf32, #tpu.memory_space<vmem>>, vector<8x256xf32>
    %c0_4 = arith.constant 0 : index
    %c128 = arith.constant 128 : index
    %4 = vector.load %arg7[%c0_4, %c128] : memref<8x512xf32, #tpu.memory_space<vmem>>, vector<8x256xf32>
    tpu.vector_store %arg7[%c0_4, %c128], %3 {strides = array<i32>} : memref<8x512xf32, #tpu.memory_space<vmem>>, vector<8x256xf32>,
    %c0_5 = arith.constant 0 : index
    %c0_6 = arith.constant 0 : index
    %5 = vector.load %arg2[%c0_5, %c0_6] : memref<2x256xf32, #tpu.memory_space<vmem>>, vector<1x256xf32>
    %c1 = arith.constant 1 : index
    %c0_7 = arith.constant 0 : index
    %6 = vector.load %arg2[%c1, %c0_7] : memref<2x256xf32, #tpu.memory_space<vmem>>, vector<1x256xf32>
    %c0_8 = arith.constant 0 : index
    %c111 = arith.constant 111 : index
    %7 = vector.load %arg7[%c0_8, %c111] : memref<8x512xf32, #tpu.memory_space<vmem>>, vector<8x256xf32>
    %c0_9 = arith.constant 0 : index
    %c0_10 = arith.constant 0 : index
    %8 = vector.load %arg3[%c0_9, %c0_10] : memref<8x9xf32, #tpu.memory_space<vmem>>, vector<8x1xf32>
    %9 = vector.broadcast %8 : vector<8x1xf32> to vector<8x256xf32>
    %10 = arith.mulf %7, %9 : vector<8x256xf32>
    %c0_11 = arith.constant 0 : index
    %c127 = arith.constant 127 : index
    %11 = vector.load %arg7[%c0_11, %c127] : memref<8x512xf32, #tpu.memory_space<vmem>>, vector<8x256xf32>
    %c0_12 = arith.constant 0 : index
    %c3 = arith.constant 3 : index
    %12 = vector.load %arg3[%c0_12, %c3] : memref<8x9xf32, #tpu.memory_space<vmem>>, vector<8x1xf32>
    %13 = vector.broadcast %12 : vector<8x1xf32> to vector<8x256xf32>
    %14 = arith.mulf %11, %13 : vector<8x256xf32>
    %15 = arith.addf %10, %14 : vector<8x256xf32>
    %c0_13 = arith.constant 0 : index
    %c143 = arith.constant 143 : index
    %16 = vector.load %arg7[%c0_13, %c143] : memref<8x512xf32, #tpu.memory_space<vmem>>, vector<8x256xf32>
    %c0_14 = arith.constant 0 : index
    %c6 = arith.constant 6 : index
    %17 = vector.load %arg3[%c0_14, %c6] : memref<8x9xf32, #tpu.memory_space<vmem>>, vector<8x1xf32>
    %18 = vector.broadcast %17 : vector<8x1xf32> to vector<8x256xf32>
    %19 = arith.mulf %16, %18 : vector<8x256xf32>
    %20 = arith.addf %15, %19 : vector<8x256xf32>
    %21 = vector.broadcast %5 : vector<1x256xf32> to vector<8x256xf32>
    %22 = arith.mulf %20, %21 : vector<8x256xf32>
    %c0_15 = arith.constant 0 : index
    %c112 = arith.constant 112 : index
    %23 = vector.load %arg7[%c0_15, %c112] : memref<8x512xf32, #tpu.memory_space<vmem>>, vector<8x256xf32>
    %c0_16 = arith.constant 0 : index
    %c1_17 = arith.constant 1 : index
    %24 = vector.load %arg3[%c0_16, %c1_17] : memref<8x9xf32, #tpu.memory_space<vmem>>, vector<8x1xf32>
    %25 = vector.broadcast %24 : vector<8x1xf32> to vector<8x256xf32>
    %26 = arith.mulf %23, %25 : vector<8x256xf32>
    %c0_18 = arith.constant 0 : index
    %c128_19 = arith.constant 128 : index
    %27 = vector.load %arg7[%c0_18, %c128_19] : memref<8x512xf32, #tpu.memory_space<vmem>>, vector<8x256xf32>
    %c0_20 = arith.constant 0 : index
    %c4 = arith.constant 4 : index
    %28 = vector.load %arg3[%c0_20, %c4] : memref<8x9xf32, #tpu.memory_space<vmem>>, vector<8x1xf32>
    %29 = vector.broadcast %28 : vector<8x1xf32> to vector<8x256xf32>
    %30 = arith.mulf %27, %29 : vector<8x256xf32>
    %31 = arith.addf %26, %30 : vector<8x256xf32>
    %c0_21 = arith.constant 0 : index
    %c144 = arith.constant 144 : index
    %32 = vector.load %arg7[%c0_21, %c144] : memref<8x512xf32, #tpu.memory_space<vmem>>, vector<8x256xf32>
    %c0_22 = arith.constant 0 : index
    %c7 = arith.constant 7 : index
    %33 = vector.load %arg3[%c0_22, %c7] : memref<8x9xf32, #tpu.memory_space<vmem>>, vector<8x1xf32>
    %34 = vector.broadcast %33 : vector<8x1xf32> to vector<8x256xf32>
    %35 = arith.mulf %32, %34 : vector<8x256xf32>
    %36 = arith.addf %31, %35 : vector<8x256xf32>
    %37 = arith.addf %22, %36 : vector<8x256xf32>
    %c0_23 = arith.constant 0 : index
    %c113 = arith.constant 113 : index
    %38 = vector.load %arg7[%c0_23, %c113] : memref<8x512xf32, #tpu.memory_space<vmem>>, vector<8x256xf32>
    %c0_24 = arith.constant 0 : index
    %c2 = arith.constant 2 : index
    %39 = vector.load %arg3[%c0_24, %c2] : memref<8x9xf32, #tpu.memory_space<vmem>>, vector<8x1xf32>
    %40 = vector.broadcast %39 : vector<8x1xf32> to vector<8x256xf32>
    %41 = arith.mulf %38, %40 : vector<8x256xf32>
    %c0_25 = arith.constant 0 : index
    %c129 = arith.constant 129 : index
    %42 = vector.load %arg7[%c0_25, %c129] : memref<8x512xf32, #tpu.memory_space<vmem>>, vector<8x256xf32>
    %c0_26 = arith.constant 0 : index
    %c5 = arith.constant 5 : index
    %43 = vector.load %arg3[%c0_26, %c5] : memref<8x9xf32, #tpu.memory_space<vmem>>, vector<8x1xf32>
    %44 = vector.broadcast %43 : vector<8x1xf32> to vector<8x256xf32>
    %45 = arith.mulf %42, %44 : vector<8x256xf32>
    %46 = arith.addf %41, %45 : vector<8x256xf32>
    %c0_27 = arith.constant 0 : index
    %c145 = arith.constant 145 : index
    %47 = vector.load %arg7[%c0_27, %c145] : memref<8x512xf32, #tpu.memory_space<vmem>>, vector<8x256xf32>
    %c0_28 = arith.constant 0 : index
    %c8 = arith.constant 8 : index
    %48 = vector.load %arg3[%c0_28, %c8] : memref<8x9xf32, #tpu.memory_space<vmem>>, vector<8x1xf32>
    %49 = vector.broadcast %48 : vector<8x1xf32> to vector<8x256xf32>
    %50 = arith.mulf %47, %49 : vector<8x256xf32>
    %51 = arith.addf %46, %50 : vector<8x256xf32>
    %52 = vector.broadcast %6 : vector<1x256xf32> to vector<8x256xf32>
    %53 = arith.mulf %51, %52 : vector<8x256xf32>
    %54 = arith.addf %37, %53 : vector<8x256xf32>
    %c0_29 = arith.constant 0 : index
    %c0_30 = arith.constant 0 : index
    %55 = vector.load %arg8[%c0_29, %c0_30] : memref<8x256xf32, #tpu.memory_space<vmem>>, vector<8x256xf32>
    tpu.vector_store %arg8[%c0_29, %c0_30], %54 {strides = array<i32>} : memref<8x256xf32, #tpu.memory_space<vmem>>, vector<8x256xf32>,
    %c0_31 = arith.constant 0 : index
    %c0_32 = arith.constant 0 : index
    %56 = vector.load %arg5[%c0_31, %c0_32] : memref<8x1xf32, #tpu.memory_space<vmem>>, vector<8x1xf32>
    %c0_33 = arith.constant 0 : index
    %c0_34 = arith.constant 0 : index
    %57 = vector.load %arg8[%c0_33, %c0_34] : memref<8x256xf32, #tpu.memory_space<vmem>>, vector<1x256xf32>
    %c0_35 = arith.constant 0 : index
    %c0_36 = arith.constant 0 : index
    %58 = vector.load %arg4[%c0_35, %c0_36] : memref<8x4xf32, #tpu.memory_space<vmem>>, vector<8x1xf32>
    %59 = vector.broadcast %57 : vector<1x256xf32> to vector<8x256xf32>
    %60 = vector.broadcast %58 : vector<8x1xf32> to vector<8x256xf32>
    %61 = arith.mulf %59, %60 : vector<8x256xf32>
    %c1_37 = arith.constant 1 : index
    %c0_38 = arith.constant 0 : index
    %62 = vector.load %arg8[%c1_37, %c0_38] : memref<8x256xf32, #tpu.memory_space<vmem>>, vector<1x256xf32>
    %c0_39 = arith.constant 0 : index
    %c1_40 = arith.constant 1 : index
    %63 = vector.load %arg4[%c0_39, %c1_40] : memref<8x4xf32, #tpu.memory_space<vmem>>, vector<8x1xf32>
    %64 = vector.broadcast %62 : vector<1x256xf32> to vector<8x256xf32>
    %65 = vector.broadcast %63 : vector<8x1xf32> to vector<8x256xf32>
    %66 = arith.mulf %64, %65 : vector<8x256xf32>
    %67 = arith.addf %61, %66 : vector<8x256xf32>
    %c2_41 = arith.constant 2 : index
    %c0_42 = arith.constant 0 : index
    %68 = vector.load %arg8[%c2_41, %c0_42] : memref<8x256xf32, #tpu.memory_space<vmem>>, vector<1x256xf32>
    %c0_43 = arith.constant 0 : index
    %c2_44 = arith.constant 2 : index
    %69 = vector.load %arg4[%c0_43, %c2_44] : memref<8x4xf32, #tpu.memory_space<vmem>>, vector<8x1xf32>
    %70 = vector.broadcast %68 : vector<1x256xf32> to vector<8x256xf32>
    %71 = vector.broadcast %69 : vector<8x1xf32> to vector<8x256xf32>
    %72 = arith.mulf %70, %71 : vector<8x256xf32>
    %73 = arith.addf %67, %72 : vector<8x256xf32>
    %c3_45 = arith.constant 3 : index
    %c0_46 = arith.constant 0 : index
    %74 = vector.load %arg8[%c3_45, %c0_46] : memref<8x256xf32, #tpu.memory_space<vmem>>, vector<1x256xf32>
    %c0_47 = arith.constant 0 : index
    %c3_48 = arith.constant 3 : index
    %75 = vector.load %arg4[%c0_47, %c3_48] : memref<8x4xf32, #tpu.memory_space<vmem>>, vector<8x1xf32>
    %76 = vector.broadcast %74 : vector<1x256xf32> to vector<8x256xf32>
    %77 = vector.broadcast %75 : vector<8x1xf32> to vector<8x256xf32>
    %78 = arith.mulf %76, %77 : vector<8x256xf32>
    %79 = arith.addf %73, %78 : vector<8x256xf32>
    %80 = vector.broadcast %56 : vector<8x1xf32> to vector<8x256xf32>
    %81 = arith.addf %79, %80 : vector<8x256xf32>
    %cst_49 = arith.constant 0.000000e+00 : f32
    %82 = vector.broadcast %cst_49 : f32 to vector<8x256xf32>
    %83 = arith.maximumf %81, %82 : vector<8x256xf32>
    %c0_50 = arith.constant 0 : index
    %c0_51 = arith.constant 0 : index
    %84 = vector.load %arg6[%c0_50, %c0_51] : memref<16x256xf32, #tpu.memory_space<vmem>>, vector<8x256xf32>
    tpu.vector_store %arg6[%c0_50, %c0_51], %83 {strides = array<i32>} : memref<16x256xf32, #tpu.memory_space<vmem>>, vector<8x256xf32>,
    %c4_52 = arith.constant 4 : index
    %c0_53 = arith.constant 0 : index
    %85 = vector.load %arg8[%c4_52, %c0_53] : memref<8x256xf32, #tpu.memory_space<vmem>>, vector<1x256xf32>
    %c0_54 = arith.constant 0 : index
    %c0_55 = arith.constant 0 : index
    %86 = vector.load %arg4[%c0_54, %c0_55] : memref<8x4xf32, #tpu.memory_space<vmem>>, vector<8x1xf32>
    %87 = vector.broadcast %85 : vector<1x256xf32> to vector<8x256xf32>
    %88 = vector.broadcast %86 : vector<8x1xf32> to vector<8x256xf32>
    %89 = arith.mulf %87, %88 : vector<8x256xf32>
    %c5_56 = arith.constant 5 : index
    %c0_57 = arith.constant 0 : index
    %90 = vector.load %arg8[%c5_56, %c0_57] : memref<8x256xf32, #tpu.memory_space<vmem>>, vector<1x256xf32>
    %c0_58 = arith.constant 0 : index
    %c1_59 = arith.constant 1 : index
    %91 = vector.load %arg4[%c0_58, %c1_59] : memref<8x4xf32, #tpu.memory_space<vmem>>, vector<8x1xf32>
    %92 = vector.broadcast %90 : vector<1x256xf32> to vector<8x256xf32>
    %93 = vector.broadcast %91 : vector<8x1xf32> to vector<8x256xf32>
    %94 = arith.mulf %92, %93 : vector<8x256xf32>
    %95 = arith.addf %89, %94 : vector<8x256xf32>
    %c6_60 = arith.constant 6 : index
    %c0_61 = arith.constant 0 : index
    %96 = vector.load %arg8[%c6_60, %c0_61] : memref<8x256xf32, #tpu.memory_space<vmem>>, vector<1x256xf32>
    %c0_62 = arith.constant 0 : index
    %c2_63 = arith.constant 2 : index
    %97 = vector.load %arg4[%c0_62, %c2_63] : memref<8x4xf32, #tpu.memory_space<vmem>>, vector<8x1xf32>
    %98 = vector.broadcast %96 : vector<1x256xf32> to vector<8x256xf32>
    %99 = vector.broadcast %97 : vector<8x1xf32> to vector<8x256xf32>
    %100 = arith.mulf %98, %99 : vector<8x256xf32>
    %101 = arith.addf %95, %100 : vector<8x256xf32>
    %c7_64 = arith.constant 7 : index
    %c0_65 = arith.constant 0 : index
    %102 = vector.load %arg8[%c7_64, %c0_65] : memref<8x256xf32, #tpu.memory_space<vmem>>, vector<1x256xf32>
    %c0_66 = arith.constant 0 : index
    %c3_67 = arith.constant 3 : index
    %103 = vector.load %arg4[%c0_66, %c3_67] : memref<8x4xf32, #tpu.memory_space<vmem>>, vector<8x1xf32>
    %104 = vector.broadcast %102 : vector<1x256xf32> to vector<8x256xf32>
    %105 = vector.broadcast %103 : vector<8x1xf32> to vector<8x256xf32>
    %106 = arith.mulf %104, %105 : vector<8x256xf32>
    %107 = arith.addf %101, %106 : vector<8x256xf32>
    %108 = vector.broadcast %56 : vector<8x1xf32> to vector<8x256xf32>
    %109 = arith.addf %107, %108 : vector<8x256xf32>
    %cst_68 = arith.constant 0.000000e+00 : f32
    %110 = vector.broadcast %cst_68 : f32 to vector<8x256xf32>
    %111 = arith.maximumf %109, %110 : vector<8x256xf32>
    %c8_69 = arith.constant 8 : index
    %c0_70 = arith.constant 0 : index
    %112 = vector.load %arg6[%c8_69, %c0_70] : memref<16x256xf32, #tpu.memory_space<vmem>>, vector<8x256xf32>
    tpu.vector_store %arg6[%c8_69, %c0_70], %111 {strides = array<i32>} : memref<16x256xf32, #tpu.memory_space<vmem>>, vector<8x256xf32>,
    return
  }
  func.func @transform_0(%arg0: i32) -> (i32, i32) {
    %c0_i32 = arith.constant 0 : i32
    %c0_i32_0 = arith.constant 0 : i32
    return %arg0, %c0_i32 : i32, i32
  }
  func.func @transform_1(%arg0: i32) -> (i32, i32) {
    %c0_i32 = arith.constant 0 : i32
    %c0_i32_0 = arith.constant 0 : i32
    %c0_i32_1 = arith.constant 0 : i32
    return %c0_i32, %c0_i32_0 : i32, i32
  }
  func.func @transform_2(%arg0: i32) -> (i32, i32) {
    %c0_i32 = arith.constant 0 : i32
    %c0_i32_0 = arith.constant 0 : i32
    %c0_i32_1 = arith.constant 0 : i32
    return %c0_i32, %c0_i32_0 : i32, i32
  }
  func.func @transform_3(%arg0: i32) -> (i32, i32) {
    %c0_i32 = arith.constant 0 : i32
    %c0_i32_0 = arith.constant 0 : i32
    %c0_i32_1 = arith.constant 0 : i32
    return %c0_i32, %c0_i32_0 : i32, i32
  }
  func.func @transform_4(%arg0: i32) -> (i32, i32) {
    %c0_i32 = arith.constant 0 : i32
    %c0_i32_0 = arith.constant 0 : i32
    %c0_i32_1 = arith.constant 0 : i32
    return %c0_i32, %c0_i32_0 : i32, i32
  }
  func.func @transform_5(%arg0: i32) -> (i32, i32) {
    %c0_i32 = arith.constant 0 : i32
    %c0_i32_0 = arith.constant 0 : i32
    return %arg0, %c0_i32 : i32, i32
  }
}

</mosaic_0001>

<llo_original>
// kernel: tpu_custom_call.1
$region0: #{tpu_custom_call.1}
  #allocation0 [shape = 'u32[]', space=smem, size = 0x4, offset = 0x4, fixed_abs, tag = 'smem constant byte address 0x4 - core index']
  #allocation1 [shape = 'u32[72,128]{1,0:T(1,128)}', space=vmem, size = 0x9000, scoped, tag = 'internal scratch']
  #allocation2 [shape = 'f32[8,512]{1,0:T(8,128)}', space=vmem, size = 0x4000, scoped, tag = 'scratch operand']
  #allocation3 [shape = 'f32[8,256]{1,0:T(8,128)}', space=vmem, size = 0x2000, scoped, tag = 'scratch operand']
  %s0 = inlined_call_operand.vmem [shape: f32[8,256], index: 0, kind: input, shape index: {}]
  %s1 = inlined_call_operand.vmem [shape: f32[2,256], index: 1, kind: input, shape index: {}]
  %s2 = inlined_call_operand.hbm [shape: f32[8,9], index: 2, kind: input, shape index: {}]
  %s3 = inlined_call_operand.vmem [shape: f32[8,4], index: 3, kind: input, shape index: {}]
  %s4 = inlined_call_operand.vmem [shape: f32[8,1], index: 4, kind: input, shape index: {}]
  %s5 = inlined_call_operand.hbm [shape: f32[16,256], index: 5, kind: output, shape index: {}]
  %s6 = sld [smem:[#allocation0]]
  $region34: #{tpu_custom_call.1} parent=0
    _
  %s8 = ssub.s32 1, %s6
  %s9 = scalar_select 0, %s8, %s6
  $region1: #{tpu_custom_call.1} parent=0
    #allocation4 [shape = 'u8[4096]{0}', space=vmem, size = 0x1000, scoped, tag = 'input window, operand 2, single buffered']
    #allocation5 [shape = 's32[1]{0}', space=sflag, size = 0x4, scoped, tag = 'scoped memory for tpu_custom_call.1']
    #allocation6 [shape = 's32[1]{0}', space=sflag, size = 0x4, scoped, tag = 'scoped memory for tpu_custom_call.1']
    #allocation7 [shape = 'u8[16384]{0}', space=vmem, size = 0x4000, scoped, tag = 'output window, operand 0, single buffered']
    %10 = vsyncpa [#allocation5], 0
    %11 = vsyncpa [#allocation6], 0
    // Predicated region
    $region2: #{tpu_custom_call.1} parent=1 // pred_check
      _
    $region3: #{tpu_custom_call.1} parent=1 // pred_check_branch
      %13 = sbr.rel (0) target = $region5
    $region4: #{tpu_custom_call.1} parent=1 // pred_region
      _
    $region5: #{tpu_custom_call.1} parent=1 // pred_fallthru
      _
    // Predicated region
    $region6: #{tpu_custom_call.1} parent=1 // pred_check
      _
    $region7: #{tpu_custom_call.1} parent=1 // pred_check_branch
      %15 = sbr.rel (0) target = $region9
    $region8: #{tpu_custom_call.1} parent=1 // pred_region
      _
    $region9: #{tpu_custom_call.1} parent=1 // pred_fallthru
      _
    // Predicated region
    $region10: #{tpu_custom_call.1} parent=1 // pred_check
      _
    $region11: #{tpu_custom_call.1} parent=1 // pred_check_branch
      %17 = sbr.rel (0) target = $region13
    $region12: #{tpu_custom_call.1} parent=1 // pred_region
      %19 = vsyncadd [#allocation5], 0
      %s21 = sshll.u32 %s2, 4
      %s22 = int_to_ptr.hbm [resolvable:$true] %s21
      %s23 = sshll.u32 [#allocation4], 4
      %s24 = int_to_ptr.vmem [resolvable:$true] %s23
      %26 = dma.hbm_to_vmem [thread:$0]  %s22, 128, %s24, [#allocation5]
    $region13: #{tpu_custom_call.1} parent=1 // pred_fallthru
      _
    // Predicated region
    $region14: #{tpu_custom_call.1} parent=1 // pred_check
      _
    $region15: #{tpu_custom_call.1} parent=1 // pred_check_branch
      %28 = sbr.rel (0) target = $region17
    $region16: #{tpu_custom_call.1} parent=1 // pred_region
      _
    $region17: #{tpu_custom_call.1} parent=1 // pred_fallthru
      _
    // Predicated region
    $region18: #{tpu_custom_call.1} parent=1 // pred_check
      _
    $region19: #{tpu_custom_call.1} parent=1 // pred_check_branch
      %30 = sbr.rel (0) target = $region21
    $region20: #{tpu_custom_call.1} parent=1 // pred_region
      _
    $region21: #{tpu_custom_call.1} parent=1 // pred_fallthru
      _
    // Predicated region
    $region22: #{tpu_custom_call.1} parent=1 // pred_check
      _
    $region23: #{tpu_custom_call.1} parent=1 // pred_check_branch
      %32 = sbr.rel (0) target = $region25
    $region24: #{tpu_custom_call.1} parent=1 // pred_region
      %34 = dma.done [#allocation5], 128
    $region25: #{tpu_custom_call.1} parent=1 // pred_fallthru
      _
    %35 = vst [vmem:[#allocation2] sm:$0xff] 0.0
    %36 = vst [vmem:[#allocation2 + $0x18] sm:$0xff] 0.0
    %v37 = vld [vmem:[%s0] sm:$0xff]
    %v38 = vld [vmem:[%s0 + $0x8] sm:$0xff]
    %39 = vst [vmem:[#allocation2 + $0x8] sm:$0xff] %v37
    %40 = vst [vmem:[#allocation2 + $0x10] sm:$0xff] %v38
    %v41 = vld [vmem:[%s1] ss:$2 sm:$0x3]
    %s42 = scalar_lea.vmem %s1, 1
    %v43 = vld [vmem:[%s42] ss:$2 sm:$0x3]
    %v44 = vld [vmem:[#allocation2] sm:$0xff]
    %v45 = vld [vmem:[#allocation2 + $0x8] sm:$0xff]
    %v46 = vld [vmem:[#allocation2 + $0x10] sm:$0xff]
    %v47 = vld [vmem:[#allocation4] sm:$0xff]
    %49 = vset.pattern.permute.xlu0 0
    %50 = vperm.xlu0 %49, %v47
    %v51 = vpop.permute.xlu0 %50
    %v53 = vmul.f32 %v44, %v51
    %v54 = vmul.f32 %v45, %v51
    %v55 = vmul.f32 %v46, %v51
    %56 = vset.pattern.permute.xlu0 3
    %57 = vperm.xlu0 %56, %v47
    %v58 = vpop.permute.xlu0 %57
    %v60 = vmul.f32 %v44, %v58
    %v61 = vmul.f32 %v45, %v58
    %v62 = vmul.f32 %v46, %v58
    %66 = vrot.lane.b32.xlu0 %v60, 112
    %v67 = vpop.permute.xlu0 %66
    %68 = vrot.lane.b32.xlu0 %v61, 112
    %v69 = vpop.permute.xlu0 %68
    %70 = vrot.lane.b32.xlu0 %v62, 112
    %v71 = vpop.permute.xlu0 %70
    %vm72 = vcmask 916480
    %v73 = vsel %vm72, %v67, %v69
    %v74 = vsel %vm72, %v69, %v71
    %v78 = vadd.f32 %v53, %v73
    %v79 = vadd.f32 %v54, %v74
    %v80 = vadd.f32 %v55, %v71
    %v81 = vld [vmem:[#allocation2 + $0x8] sm:$0xff]
    %v82 = vld [vmem:[#allocation2 + $0x10] sm:$0xff]
    %v83 = vld [vmem:[#allocation2 + $0x18] sm:$0xff]
    %84 = vset.pattern.permute.xlu0 6
    %85 = vperm.xlu0 %84, %v47
    %v86 = vpop.permute.xlu0 %85
    %v88 = vmul.f32 %v81, %v86
    %v89 = vmul.f32 %v82, %v86
    %v90 = vmul.f32 %v83, %v86
    %94 = vrot.lane.b32.xlu0 %v88, 96
    %v95 = vpop.permute.xlu0 %94
    %96 = vrot.lane.b32.xlu0 %v89, 96
    %v97 = vpop.permute.xlu0 %96
    %98 = vrot.lane.b32.xlu0 %v90, 96
    %v99 = vpop.permute.xlu0 %98
    %vm100 = vcmask 785408
    %v101 = vsel %vm100, %v95, %v97
    %v102 = vsel %vm100, %v97, %v99
    %v106 = vadd.f32 %v78, %v95
    %v107 = vadd.f32 %v79, %v101
    %v108 = vadd.f32 %v80, %v102
    %v110 = vperm.slane %v41, 0
    %v111 = vperm.slane %v41, 1
    %112 = vrot.lane.b32.xlu0 %v110, 111
    %v113 = vpop.permute.xlu0 %112
    %114 = vrot.lane.b32.xlu0 %v111, 111
    %v115 = vpop.permute.xlu0 %114
    %vm116 = vcmask 908288
    %v117 = vsel %vm116, %v113, %v115
    %v121 = vmul.f32 %v106, %v113
    %v122 = vmul.f32 %v107, %v117
    %v123 = vmul.f32 %v108, %v115
    %124 = vset.pattern.permute.xlu0 1
    %125 = vperm.xlu0 %124, %v47
    %v126 = vpop.permute.xlu0 %125
    %v128 = vmul.f32 %v44, %v126
    %v129 = vmul.f32 %v45, %v126
    %v130 = vmul.f32 %v46, %v126
    %131 = vset.pattern.permute.xlu0 4
    %132 = vperm.xlu0 %131, %v47
    %v133 = vpop.permute.xlu0 %132
    %v135 = vmul.f32 %v45, %v133
    %v136 = vmul.f32 %v46, %v133
    %139 = vrot.lane.b32.xlu0 %v135, 112
    %v140 = vpop.permute.xlu0 %139
    %141 = vrot.lane.b32.xlu0 %v136, 112
    %v142 = vpop.permute.xlu0 %141
    %v143 = vsel %vm72, %v140, %v142
    %v147 = vadd.f32 %v128, %v140
    %v148 = vadd.f32 %v129, %v143
    %v149 = vadd.f32 %v130, %v142
    %150 = vset.pattern.permute.xlu0 7
    %151 = vperm.xlu0 %150, %v47
    %v152 = vpop.permute.xlu0 %151
    %v154 = vmul.f32 %v81, %v152
    %v155 = vmul.f32 %v82, %v152
    %v156 = vmul.f32 %v83, %v152
    %160 = vrot.lane.b32.xlu0 %v154, 96
    %v161 = vpop.permute.xlu0 %160
    %162 = vrot.lane.b32.xlu0 %v155, 96
    %v163 = vpop.permute.xlu0 %162
    %164 = vrot.lane.b32.xlu0 %v156, 96
    %v165 = vpop.permute.xlu0 %164
    %v166 = vsel %vm100, %v161, %v163
    %v167 = vsel %vm100, %v163, %v165
    %v171 = vadd.f32 %v147, %v161
    %v172 = vadd.f32 %v148, %v166
    %v173 = vadd.f32 %v149, %v167
    %177 = vrot.lane.b32.xlu0 %v171, 127
    %v178 = vpop.permute.xlu0 %177
    %179 = vrot.lane.b32.xlu0 %v172, 127
    %v180 = vpop.permute.xlu0 %179
    %181 = vrot.lane.b32.xlu0 %v173, 127
    %v182 = vpop.permute.xlu0 %181
    %vm183 = vcmask 1039360
    %v184 = vsel %vm183, %v178, %v180
    %v185 = vsel %vm183, %v180, %v182
    %v189 = vadd.f32 %v121, %v184
    %v190 = vadd.f32 %v122, %v185
    %v191 = vadd.f32 %v123, %v182
    %192 = vset.pattern.permute.xlu0 2
    %193 = vperm.xlu0 %192, %v47
    %v194 = vpop.permute.xlu0 %193
    %v196 = vmul.f32 %v44, %v194
    %v197 = vmul.f32 %v45, %v194
    %v198 = vmul.f32 %v46, %v194
    %199 = vset.pattern.permute.xlu0 5
    %200 = vperm.xlu0 %199, %v47
    %v201 = vpop.permute.xlu0 %200
    %v203 = vmul.f32 %v81, %v201
    %v204 = vmul.f32 %v82, %v201
    %v205 = vmul.f32 %v83, %v201
    %209 = vrot.lane.b32.xlu0 %v203, 112
    %v210 = vpop.permute.xlu0 %209
    %211 = vrot.lane.b32.xlu0 %v204, 112
    %v212 = vpop.permute.xlu0 %211
    %213 = vrot.lane.b32.xlu0 %v205, 112
    %v214 = vpop.permute.xlu0 %213
    %v215 = vsel %vm72, %v210, %v212
    %v216 = vsel %vm72, %v212, %v214
    %v220 = vadd.f32 %v196, %v210
    %v221 = vadd.f32 %v197, %v215
    %v222 = vadd.f32 %v198, %v216
    %223 = vset.pattern.permute.xlu0 8
    %224 = vperm.xlu0 %223, %v47
    %v225 = vpop.permute.xlu0 %224
    %v227 = vmul.f32 %v81, %v225
    %v228 = vmul.f32 %v82, %v225
    %v229 = vmul.f32 %v83, %v225
    %233 = vrot.lane.b32.xlu0 %v227, 96
    %v234 = vpop.permute.xlu0 %233
    %235 = vrot.lane.b32.xlu0 %v228, 96
    %v236 = vpop.permute.xlu0 %235
    %237 = vrot.lane.b32.xlu0 %v229, 96
    %v238 = vpop.permute.xlu0 %237
    %v239 = vsel %vm100, %v234, %v236
    %v240 = vsel %vm100, %v236, %v238
    %v244 = vadd.f32 %v220, %v234
    %v245 = vadd.f32 %v221, %v239
    %v246 = vadd.f32 %v222, %v240
    %v248 = vperm.slane %v43, 0
    %v249 = vperm.slane %v43, 1
    %250 = vrot.lane.b32.xlu0 %v248, 113
    %v251 = vpop.permute.xlu0 %250
    %252 = vrot.lane.b32.xlu0 %v249, 113
    %v253 = vpop.permute.xlu0 %252
    %vm254 = vcmask 924672
    %v255 = vsel %vm254, %v251, %v253
    %v259 = vmul.f32 %v244, %v251
    %v260 = vmul.f32 %v245, %v255
    %v261 = vmul.f32 %v246, %v253
    %265 = vrot.lane.b32.xlu0 %v259, 126
    %v266 = vpop.permute.xlu0 %265
    %267 = vrot.lane.b32.xlu0 %v260, 126
    %v268 = vpop.permute.xlu0 %267
    %269 = vrot.lane.b32.xlu0 %v261, 126
    %v270 = vpop.permute.xlu0 %269
    %vm271 = vcmask 1031168
    %v272 = vsel %vm271, %v266, %v268
    %v273 = vsel %vm271, %v268, %v270
    %v277 = vadd.f32 %v189, %v272
    %v278 = vadd.f32 %v190, %v273
    %v279 = vadd.f32 %v191, %v270
    %283 = vrot.lane.b32.xlu0 %v277, 17
    %v284 = vpop.permute.xlu0 %283
    %285 = vrot.lane.b32.xlu0 %v278, 17
    %v286 = vpop.permute.xlu0 %285
    %287 = vrot.lane.b32.xlu0 %v279, 17
    %v288 = vpop.permute.xlu0 %287
    %vm289 = vcmask 138240
    %v290 = vsel %vm289, %v284, %v286
    %v291 = vsel %vm289, %v286, %v288
    %294 = vst [vmem:[#allocation3] sm:$0xff] %v290
    %295 = vst [vmem:[#allocation3 + $0x8] sm:$0xff] %v291
    %v296 = vld [vmem:[%s4] sm:$0xff]
    %v297 = vld [vmem:[#allocation3] ss:$8 sm:$0x3]
    %v298 = vld [vmem:[%s3] sm:$0xff]
    %v300 = vperm.slane %v297, 0
    %v301 = vperm.slane %v297, 1
    %305 = vset.pattern.permute.xlu0 0
    %306 = vperm.xlu0 %305, %v298
    %v307 = vpop.permute.xlu0 %306
    %v309 = vmul.f32 %v300, %v307
    %v310 = vmul.f32 %v301, %v307
    %s311 = scalar_lea.vmem [#allocation3], 1
    %v312 = vld [vmem:[%s311] ss:$8 sm:$0x3]
    %v314 = vperm.slane %v312, 0
    %v315 = vperm.slane %v312, 1
    %318 = vset.pattern.permute.xlu0 1
    %319 = vperm.xlu0 %318, %v298
    %v320 = vpop.permute.xlu0 %319
    %v322 = vmul.f32 %v314, %v320
    %v323 = vmul.f32 %v315, %v320
    %v324 = vadd.f32 %v309, %v322
    %v325 = vadd.f32 %v310, %v323
    %s326 = scalar_lea.vmem [#allocation3], 2
    %v327 = vld [vmem:[%s326] ss:$8 sm:$0x3]
    %v329 = vperm.slane %v327, 0
    %v330 = vperm.slane %v327, 1
    %333 = vset.pattern.permute.xlu0 2
    %334 = vperm.xlu0 %333, %v298
    %v335 = vpop.permute.xlu0 %334
    %v337 = vmul.f32 %v329, %v335
    %v338 = vmul.f32 %v330, %v335
    %v339 = vadd.f32 %v324, %v337
    %v340 = vadd.f32 %v325, %v338
    %s341 = scalar_lea.vmem [#allocation3], 3
    %v342 = vld [vmem:[%s341] ss:$8 sm:$0x3]
    %v344 = vperm.slane %v342, 0
    %v345 = vperm.slane %v342, 1
    %348 = vset.pattern.permute.xlu0 3
    %349 = vperm.xlu0 %348, %v298
    %v350 = vpop.permute.xlu0 %349
    %v352 = vmul.f32 %v344, %v350
    %v353 = vmul.f32 %v345, %v350
    %v354 = vadd.f32 %v339, %v352
    %v355 = vadd.f32 %v340, %v353
    %357 = vset.pattern.permute.xlu0 0
    %358 = vperm.xlu0 %357, %v296
    %v359 = vpop.permute.xlu0 %358
    %v361 = vadd.f32 %v354, %v359
    %v362 = vadd.f32 %v355, %v359
    %v363 = vmax.f32 %v361, 0.0
    %v364 = vmax.f32 %v362, 0.0
    %365 = vst [vmem:[#allocation7] sm:$0xff] %v363
    %366 = vst [vmem:[#allocation7 + $0x8] sm:$0xff] %v364
    %s367 = scalar_lea.vmem [#allocation3], 4
    %v368 = vld [vmem:[%s367] ss:$8 sm:$0x3]
    %v369 = vld [vmem:[%s3] sm:$0xff]
    %v371 = vperm.slane %v368, 0
    %v372 = vperm.slane %v368, 1
    %376 = vset.pattern.permute.xlu0 0
    %377 = vperm.xlu0 %376, %v369
    %v378 = vpop.permute.xlu0 %377
    %v380 = vmul.f32 %v371, %v378
    %v381 = vmul.f32 %v372, %v378
    %s382 = scalar_lea.vmem [#allocation3], 5
    %v383 = vld [vmem:[%s382] ss:$8 sm:$0x3]
    %v385 = vperm.slane %v383, 0
    %v386 = vperm.slane %v383, 1
    %389 = vset.pattern.permute.xlu0 1
    %390 = vperm.xlu0 %389, %v369
    %v391 = vpop.permute.xlu0 %390
    %v393 = vmul.f32 %v385, %v391
    %v394 = vmul.f32 %v386, %v391
    %v395 = vadd.f32 %v380, %v393
    %v396 = vadd.f32 %v381, %v394
    %s397 = scalar_lea.vmem [#allocation3], 6
    %v398 = vld [vmem:[%s397] ss:$8 sm:$0x3]
    %v400 = vperm.slane %v398, 0
    %v401 = vperm.slane %v398, 1
    %404 = vset.pattern.permute.xlu0 2
    %405 = vperm.xlu0 %404, %v369
    %v406 = vpop.permute.xlu0 %405
    %v408 = vmul.f32 %v400, %v406
    %v409 = vmul.f32 %v401, %v406
    %v410 = vadd.f32 %v395, %v408
    %v411 = vadd.f32 %v396, %v409
    %s412 = scalar_lea.vmem [#allocation3], 7
    %v413 = vld [vmem:[%s412] ss:$8 sm:$0x3]
    %v415 = vperm.slane %v413, 0
    %v416 = vperm.slane %v413, 1
    %419 = vset.pattern.permute.xlu0 3
    %420 = vperm.xlu0 %419, %v369
    %v421 = vpop.permute.xlu0 %420
    %v423 = vmul.f32 %v415, %v421
    %v424 = vmul.f32 %v416, %v421
    %v425 = vadd.f32 %v410, %v423
    %v426 = vadd.f32 %v411, %v424
    %v427 = vadd.f32 %v425, %v359
    %v428 = vadd.f32 %v426, %v359
    %v429 = vmax.f32 %v427, 0.0
    %v430 = vmax.f32 %v428, 0.0
    %431 = vst [vmem:[#allocation7 + $0x10] sm:$0xff] %v429
    %432 = vst [vmem:[#allocation7 + $0x18] sm:$0xff] %v430
    // Predicated region
    $region26: #{tpu_custom_call.1} parent=1 // pred_check
      _
    $region27: #{tpu_custom_call.1} parent=1 // pred_check_branch
      %434 = sbr.rel (0) target = $region29
    $region28: #{tpu_custom_call.1} parent=1 // pred_region
      %436 = vsyncadd [#allocation6], 0
      %s437 = sshll.u32 [#allocation7], 4
      %s438 = int_to_ptr.vmem [resolvable:$true] %s437
      %s439 = sshll.u32 %s5, 4
      %s440 = int_to_ptr.hbm [resolvable:$true] %s439
      %445 = dma.vmem_to_hbm [thread:$0]  %s438, 512, %s440, [#allocation6], 256, 256, 16
    $region29: #{tpu_custom_call.1} parent=1 // pred_fallthru
      _
    // Predicated region
    $region30: #{tpu_custom_call.1} parent=1 // pred_check
      _
    $region31: #{tpu_custom_call.1} parent=1 // pred_check_branch
      %447 = sbr.rel (0) target = $region33
    $region32: #{tpu_custom_call.1} parent=1 // pred_region
      %449 = dma.done [#allocation6], 512
    $region33: #{tpu_custom_call.1} parent=1 // pred_fallthru
      _
    %450 = vsyncpa [#allocation5], 1
    %451 = vsyncpa [#allocation6], 1

</llo_original>
